<compile_context>
chip_gen: v5e
topology: v5e:2x2
jax: 0.10.0
libtpu: 0.0.40
codegen_flags: <defaults>
</compile_context>

<pallas_src>
import functools

import jax
import jax.numpy as jnp
from jax.experimental import pallas as pl
from jax.experimental.pallas import tpu as pltpu


def _unfold_kernel(x_ref, o_ref, *, n_locs, fold_size, fold_stride, batch_block):
    """Extract one row of patches (fixed hi) for a block of batch elements.

    x_ref: (batch_block, C, H, W)                 input block (constant over hi).
    o_ref: (batch_block, 1, n_locs, C, fs*fs)     patches for this (batch, hi).
    """
    fs = fold_size
    hi = pl.program_id(1)
    h0 = pl.multiple_of(hi * fold_stride, fold_stride)

    for b in range(batch_block):
        # Ref-level slice: only the fs rows needed for this patch row.
        # Shape (C, fs, W); the wi windows overlap, so load full-W rows once.
        rows = x_ref[b, :, pl.ds(h0, fs), :]
        for wi in range(n_locs):
            w0 = wi * fold_stride
            # Flatten the (fs, fs) patch into the lane dim: (C, fs*fs), built
            # with a lane-axis concatenate (XLU/VPU work on otherwise-idle
            # slots) so the store is lane-dense instead of fs/128 masked.
            patch_flat = jnp.concatenate(
                [rows[:, i, w0:w0 + fs] for i in range(fs)], axis=-1)
            o_ref[b, 0, wi] = patch_flat


def unfold(x, img_size, fold_size, *, batch_block=None):
    """Pallas equivalent of Unfold(img_size, fold_size).forward(x)."""
    assert fold_size % 2 == 0, "fold_size must be even (stride = fold_size // 2)"
    assert img_size % fold_size == 0, "img_size must be divisible by fold_size"
    fold_stride = fold_size // 2
    n_locs = 2 * (img_size // fold_size) - 1
    L = n_locs * n_locs
    N, C, H, W = x.shape
    assert H == img_size and W == img_size, "spatial dims must equal img_size"

    fs = fold_size
    isz = x.dtype.itemsize
    ff = fs * fs

    # Pick how many batch elements to process per grid step: as many as fit a
    # modest VMEM budget (amortizes per-step overhead; tiny blocks leave HBM
    # bandwidth on the table).
    if batch_block is None:
        budget = 4 * 1024 * 1024
        per_item = (C * H * W + n_locs * C * ff) * isz
        batch_block = 1
        for cand in range(1, min(N, 16) + 1):
            if N % cand == 0 and cand * per_item <= budget:
                batch_block = cand
    bn = batch_block
    assert N % bn == 0, "batch_block must divide N"

    in_block_bytes = bn * C * H * W * isz
    out_block_bytes = bn * n_locs * C * ff * isz
    # Generous but explicit scoped-VMEM budget (v5e default is only 16 MiB;
    # v7x physical VMEM is 64 MiB).
    vmem_limit = int(min(64 * 1024 * 1024,
                         max(32 * 1024 * 1024,
                             8 * (in_block_bytes + out_block_bytes))))

    kernel = functools.partial(
        _unfold_kernel,
        n_locs=n_locs,
        fold_size=fs,
        fold_stride=fold_stride,
        batch_block=bn,
    )

    # Output is produced in a lane-dense view (N, n_locs, n_locs, C, fs*fs);
    # reshaping it back to (N*L, C, fs, fs) below is a free row-major reshape.
    out = pl.pallas_call(
        kernel,
        out_shape=jax.ShapeDtypeStruct((N, n_locs, n_locs, C, ff), x.dtype),
        grid_spec=pltpu.PrefetchScalarGridSpec(
            num_scalar_prefetch=0,
            grid=(N // bn, n_locs),  # hi innermost -> input re-fetched only per batch block
            in_specs=[
                pl.BlockSpec((bn, C, H, W), lambda nb, hi: (nb, 0, 0, 0)),
            ],
            out_specs=pl.BlockSpec(
                (bn, 1, n_locs, C, ff), lambda nb, hi: (nb, hi, 0, 0, 0)
            ),
        ),
        compiler_params=pltpu.CompilerParams(
            dimension_semantics=("parallel", "parallel"),
            vmem_limit_bytes=vmem_limit,
        ),
        cost_estimate=pl.CostEstimate(
            flops=0,
            transcendentals=0,
            bytes_accessed=(N * C * H * W + N * L * C * ff) * isz,
        ),
    )(x)

    return out.reshape(N * L, C, fs, fs)


def unfold_ref(x, img_size, fold_size):
    """Pure-JAX reference matching torch.nn.Unfold + reshape/permute/reshape."""
    fold_stride = fold_size // 2
    n_locs = 2 * (img_size // fold_size) - 1
    N = x.shape[0]
    patches = []
    for n in range(N):
        for hi in range(n_locs):
            for wi in range(n_locs):
                h0 = hi * fold_stride
                w0 = wi * fold_stride
                patches.append(x[n, :, h0:h0 + fold_size, w0:w0 + fold_size])
    return jnp.stack(patches, axis=0)


if __name__ == "__main__":
    # Small shapes consistent with the module: img_size=16, fold_size=8
    #   -> fold_stride=4, n_locs=3, output (N*9, C, 8, 8)
    img_size = 16
    fold_size = 8
    N, C = 2, 4

    key = jax.random.PRNGKey(0)
    x = jax.random.normal(key, (N, C, img_size, img_size), dtype=jnp.float32)

    out = unfold(x, img_size, fold_size)
    out = jax.block_until_ready(out)

    ref = unfold_ref(x, img_size, fold_size)
    n_locs = 2 * (img_size // fold_size) - 1
    assert out.shape == ref.shape == (N * n_locs * n_locs, C, fold_size, fold_size), out.shape
    assert out.dtype == ref.dtype == jnp.float32
    assert jnp.allclose(out, ref), "Pallas unfold mismatch vs reference"

    print("KERNEL_OK")
</pallas_src>

<mosaic_0001>
module attributes {stable_mosaic.version = 11 : i64} {
  func.func @_unfold_kernel(%arg0: i32, %arg1: i32, %arg2: memref<2x4x16x16xf32, #tpu.memory_space<vmem>>, %arg3: memref<2x1x3x4x64xf32, #tpu.memory_space<vmem>>) attributes {dimension_semantics = [#tpu.dimension_semantics<parallel>, #tpu.dimension_semantics<parallel>], iteration_bounds = array<i64: 1, 3>, scalar_prefetch = 0 : i64, scratch_operands = 0 : i64, tpu.core_type = #tpu.core_type<tc>, window_params = [{transform_indices = @transform_0, window_bounds = array<i64: 2, 4, 16, 16>}, {transform_indices = @transform_1, window_bounds = array<i64: 2, 1, 3, 4, 64>}]} {
    %c4_i32 = arith.constant 4 : i32
    %0 = arith.muli %arg1, %c4_i32 : i32
    %1 = tpu.assume_multiple %0, 4 : i32
    %c0 = arith.constant 0 : index
    %c0_0 = arith.constant 0 : index
    %2 = arith.index_cast %1 : i32 to index
    %c0_1 = arith.constant 0 : index
    %3 = vector.load %arg2[%c0, %c0_0, %2, %c0_1] : memref<2x4x16x16xf32, #tpu.memory_space<vmem>>, vector<1x4x8x16xf32>
    %4 = vector.shape_cast %3 : vector<1x4x8x16xf32> to vector<4x8x16xf32>
    %5 = vector.extract_strided_slice %4 {offsets = [0, 0, 0], sizes = [4, 1, 8], strides = [1, 1, 1]} : vector<4x8x16xf32> to vector<4x1x8xf32>
    %6 = vector.shape_cast %5 : vector<4x1x8xf32> to vector<4x8xf32>
    %7 = vector.extract_strided_slice %4 {offsets = [0, 1, 0], sizes = [4, 1, 8], strides = [1, 1, 1]} : vector<4x8x16xf32> to vector<4x1x8xf32>
    %8 = vector.shape_cast %7 : vector<4x1x8xf32> to vector<4x8xf32>
    %9 = vector.extract_strided_slice %4 {offsets = [0, 2, 0], sizes = [4, 1, 8], strides = [1, 1, 1]} : vector<4x8x16xf32> to vector<4x1x8xf32>
    %10 = vector.shape_cast %9 : vector<4x1x8xf32> to vector<4x8xf32>
    %11 = vector.extract_strided_slice %4 {offsets = [0, 3, 0], sizes = [4, 1, 8], strides = [1, 1, 1]} : vector<4x8x16xf32> to vector<4x1x8xf32>
    %12 = vector.shape_cast %11 : vector<4x1x8xf32> to vector<4x8xf32>
    %13 = vector.extract_strided_slice %4 {offsets = [0, 4, 0], sizes = [4, 1, 8], strides = [1, 1, 1]} : vector<4x8x16xf32> to vector<4x1x8xf32>
    %14 = vector.shape_cast %13 : vector<4x1x8xf32> to vector<4x8xf32>
    %15 = vector.extract_strided_slice %4 {offsets = [0, 5, 0], sizes = [4, 1, 8], strides = [1, 1, 1]} : vector<4x8x16xf32> to vector<4x1x8xf32>
    %16 = vector.shape_cast %15 : vector<4x1x8xf32> to vector<4x8xf32>
    %17 = vector.extract_strided_slice %4 {offsets = [0, 6, 0], sizes = [4, 1, 8], strides = [1, 1, 1]} : vector<4x8x16xf32> to vector<4x1x8xf32>
    %18 = vector.shape_cast %17 : vector<4x1x8xf32> to vector<4x8xf32>
    %19 = vector.extract_strided_slice %4 {offsets = [0, 7, 0], sizes = [4, 1, 8], strides = [1, 1, 1]} : vector<4x8x16xf32> to vector<4x1x8xf32>
    %20 = vector.shape_cast %19 : vector<4x1x8xf32> to vector<4x8xf32>
    %21 = tpu.concatenate %6, %8, %10, %12, %14, %16, %18, %20 in 1 : vector<4x8xf32>, vector<4x8xf32>, vector<4x8xf32>, vector<4x8xf32>, vector<4x8xf32>, vector<4x8xf32>, vector<4x8xf32>, vector<4x8xf32> -> vector<4x64xf32>
    %c0_2 = arith.constant 0 : index
    %c0_3 = arith.constant 0 : index
    %c0_4 = arith.constant 0 : index
    %c0_5 = arith.constant 0 : index
    %c0_6 = arith.constant 0 : index
    %22 = vector.load %arg3[%c0_2, %c0_3, %c0_4, %c0_5, %c0_6] : memref<2x1x3x4x64xf32, #tpu.memory_space<vmem>>, vector<1x1x1x4x64xf32>
    %23 = vector.shape_cast %22 : vector<1x1x1x4x64xf32> to vector<4x64xf32>
    %24 = vector.shape_cast %21 : vector<4x64xf32> to vector<1x1x1x4x64xf32>
    tpu.vector_store %arg3[%c0_2, %c0_3, %c0_4, %c0_5, %c0_6], %24 {strides = array<i32>} : memref<2x1x3x4x64xf32, #tpu.memory_space<vmem>>, vector<1x1x1x4x64xf32>,
    %25 = vector.extract_strided_slice %4 {offsets = [0, 0, 4], sizes = [4, 1, 8], strides = [1, 1, 1]} : vector<4x8x16xf32> to vector<4x1x8xf32>
    %26 = vector.shape_cast %25 : vector<4x1x8xf32> to vector<4x8xf32>
    %27 = vector.extract_strided_slice %4 {offsets = [0, 1, 4], sizes = [4, 1, 8], strides = [1, 1, 1]} : vector<4x8x16xf32> to vector<4x1x8xf32>
    %28 = vector.shape_cast %27 : vector<4x1x8xf32> to vector<4x8xf32>
    %29 = vector.extract_strided_slice %4 {offsets = [0, 2, 4], sizes = [4, 1, 8], strides = [1, 1, 1]} : vector<4x8x16xf32> to vector<4x1x8xf32>
    %30 = vector.shape_cast %29 : vector<4x1x8xf32> to vector<4x8xf32>
    %31 = vector.extract_strided_slice %4 {offsets = [0, 3, 4], sizes = [4, 1, 8], strides = [1, 1, 1]} : vector<4x8x16xf32> to vector<4x1x8xf32>
    %32 = vector.shape_cast %31 : vector<4x1x8xf32> to vector<4x8xf32>
    %33 = vector.extract_strided_slice %4 {offsets = [0, 4, 4], sizes = [4, 1, 8], strides = [1, 1, 1]} : vector<4x8x16xf32> to vector<4x1x8xf32>
    %34 = vector.shape_cast %33 : vector<4x1x8xf32> to vector<4x8xf32>
    %35 = vector.extract_strided_slice %4 {offsets = [0, 5, 4], sizes = [4, 1, 8], strides = [1, 1, 1]} : vector<4x8x16xf32> to vector<4x1x8xf32>
    %36 = vector.shape_cast %35 : vector<4x1x8xf32> to vector<4x8xf32>
    %37 = vector.extract_strided_slice %4 {offsets = [0, 6, 4], sizes = [4, 1, 8], strides = [1, 1, 1]} : vector<4x8x16xf32> to vector<4x1x8xf32>
    %38 = vector.shape_cast %37 : vector<4x1x8xf32> to vector<4x8xf32>
    %39 = vector.extract_strided_slice %4 {offsets = [0, 7, 4], sizes = [4, 1, 8], strides = [1, 1, 1]} : vector<4x8x16xf32> to vector<4x1x8xf32>
    %40 = vector.shape_cast %39 : vector<4x1x8xf32> to vector<4x8xf32>
    %41 = tpu.concatenate %26, %28, %30, %32, %34, %36, %38, %40 in 1 : vector<4x8xf32>, vector<4x8xf32>, vector<4x8xf32>, vector<4x8xf32>, vector<4x8xf32>, vector<4x8xf32>, vector<4x8xf32>, vector<4x8xf32> -> vector<4x64xf32>
    %c0_7 = arith.constant 0 : index
    %c0_8 = arith.constant 0 : index
    %c1 = arith.constant 1 : index
    %c0_9 = arith.constant 0 : index
    %c0_10 = arith.constant 0 : index
    %42 = vector.load %arg3[%c0_7, %c0_8, %c1, %c0_9, %c0_10] : memref<2x1x3x4x64xf32, #tpu.memory_space<vmem>>, vector<1x1x1x4x64xf32>
    %43 = vector.shape_cast %42 : vector<1x1x1x4x64xf32> to vector<4x64xf32>
    %44 = vector.shape_cast %41 : vector<4x64xf32> to vector<1x1x1x4x64xf32>
    tpu.vector_store %arg3[%c0_7, %c0_8, %c1, %c0_9, %c0_10], %44 {strides = array<i32>} : memref<2x1x3x4x64xf32, #tpu.memory_space<vmem>>, vector<1x1x1x4x64xf32>,
    %45 = vector.extract_strided_slice %4 {offsets = [0, 0, 8], sizes = [4, 1, 8], strides = [1, 1, 1]} : vector<4x8x16xf32> to vector<4x1x8xf32>
    %46 = vector.shape_cast %45 : vector<4x1x8xf32> to vector<4x8xf32>
    %47 = vector.extract_strided_slice %4 {offsets = [0, 1, 8], sizes = [4, 1, 8], strides = [1, 1, 1]} : vector<4x8x16xf32> to vector<4x1x8xf32>
    %48 = vector.shape_cast %47 : vector<4x1x8xf32> to vector<4x8xf32>
    %49 = vector.extract_strided_slice %4 {offsets = [0, 2, 8], sizes = [4, 1, 8], strides = [1, 1, 1]} : vector<4x8x16xf32> to vector<4x1x8xf32>
    %50 = vector.shape_cast %49 : vector<4x1x8xf32> to vector<4x8xf32>
    %51 = vector.extract_strided_slice %4 {offsets = [0, 3, 8], sizes = [4, 1, 8], strides = [1, 1, 1]} : vector<4x8x16xf32> to vector<4x1x8xf32>
    %52 = vector.shape_cast %51 : vector<4x1x8xf32> to vector<4x8xf32>
    %53 = vector.extract_strided_slice %4 {offsets = [0, 4, 8], sizes = [4, 1, 8], strides = [1, 1, 1]} : vector<4x8x16xf32> to vector<4x1x8xf32>
    %54 = vector.shape_cast %53 : vector<4x1x8xf32> to vector<4x8xf32>
    %55 = vector.extract_strided_slice %4 {offsets = [0, 5, 8], sizes = [4, 1, 8], strides = [1, 1, 1]} : vector<4x8x16xf32> to vector<4x1x8xf32>
    %56 = vector.shape_cast %55 : vector<4x1x8xf32> to vector<4x8xf32>
    %57 = vector.extract_strided_slice %4 {offsets = [0, 6, 8], sizes = [4, 1, 8], strides = [1, 1, 1]} : vector<4x8x16xf32> to vector<4x1x8xf32>
    %58 = vector.shape_cast %57 : vector<4x1x8xf32> to vector<4x8xf32>
    %59 = vector.extract_strided_slice %4 {offsets = [0, 7, 8], sizes = [4, 1, 8], strides = [1, 1, 1]} : vector<4x8x16xf32> to vector<4x1x8xf32>
    %60 = vector.shape_cast %59 : vector<4x1x8xf32> to vector<4x8xf32>
    %61 = tpu.concatenate %46, %48, %50, %52, %54, %56, %58, %60 in 1 : vector<4x8xf32>, vector<4x8xf32>, vector<4x8xf32>, vector<4x8xf32>, vector<4x8xf32>, vector<4x8xf32>, vector<4x8xf32>, vector<4x8xf32> -> vector<4x64xf32>
    %c0_11 = arith.constant 0 : index
    %c0_12 = arith.constant 0 : index
    %c2 = arith.constant 2 : index
    %c0_13 = arith.constant 0 : index
    %c0_14 = arith.constant 0 : index
    %62 = vector.load %arg3[%c0_11, %c0_12, %c2, %c0_13, %c0_14] : memref<2x1x3x4x64xf32, #tpu.memory_space<vmem>>, vector<1x1x1x4x64xf32>
    %63 = vector.shape_cast %62 : vector<1x1x1x4x64xf32> to vector<4x64xf32>
    %64 = vector.shape_cast %61 : vector<4x64xf32> to vector<1x1x1x4x64xf32>
    tpu.vector_store %arg3[%c0_11, %c0_12, %c2, %c0_13, %c0_14], %64 {strides = array<i32>} : memref<2x1x3x4x64xf32, #tpu.memory_space<vmem>>, vector<1x1x1x4x64xf32>,
    %c1_15 = arith.constant 1 : index
    %c0_16 = arith.constant 0 : index
    %65 = arith.index_cast %1 : i32 to index
    %c0_17 = arith.constant 0 : index
    %66 = vector.load %arg2[%c1_15, %c0_16, %65, %c0_17] : memref<2x4x16x16xf32, #tpu.memory_space<vmem>>, vector<1x4x8x16xf32>
    %67 = vector.shape_cast %66 : vector<1x4x8x16xf32> to vector<4x8x16xf32>
    %68 = vector.extract_strided_slice %67 {offsets = [0, 0, 0], sizes = [4, 1, 8], strides = [1, 1, 1]} : vector<4x8x16xf32> to vector<4x1x8xf32>
    %69 = vector.shape_cast %68 : vector<4x1x8xf32> to vector<4x8xf32>
    %70 = vector.extract_strided_slice %67 {offsets = [0, 1, 0], sizes = [4, 1, 8], strides = [1, 1, 1]} : vector<4x8x16xf32> to vector<4x1x8xf32>
    %71 = vector.shape_cast %70 : vector<4x1x8xf32> to vector<4x8xf32>
    %72 = vector.extract_strided_slice %67 {offsets = [0, 2, 0], sizes = [4, 1, 8], strides = [1, 1, 1]} : vector<4x8x16xf32> to vector<4x1x8xf32>
    %73 = vector.shape_cast %72 : vector<4x1x8xf32> to vector<4x8xf32>
    %74 = vector.extract_strided_slice %67 {offsets = [0, 3, 0], sizes = [4, 1, 8], strides = [1, 1, 1]} : vector<4x8x16xf32> to vector<4x1x8xf32>
    %75 = vector.shape_cast %74 : vector<4x1x8xf32> to vector<4x8xf32>
    %76 = vector.extract_strided_slice %67 {offsets = [0, 4, 0], sizes = [4, 1, 8], strides = [1, 1, 1]} : vector<4x8x16xf32> to vector<4x1x8xf32>
    %77 = vector.shape_cast %76 : vector<4x1x8xf32> to vector<4x8xf32>
    %78 = vector.extract_strided_slice %67 {offsets = [0, 5, 0], sizes = [4, 1, 8], strides = [1, 1, 1]} : vector<4x8x16xf32> to vector<4x1x8xf32>
    %79 = vector.shape_cast %78 : vector<4x1x8xf32> to vector<4x8xf32>
    %80 = vector.extract_strided_slice %67 {offsets = [0, 6, 0], sizes = [4, 1, 8], strides = [1, 1, 1]} : vector<4x8x16xf32> to vector<4x1x8xf32>
    %81 = vector.shape_cast %80 : vector<4x1x8xf32> to vector<4x8xf32>
    %82 = vector.extract_strided_slice %67 {offsets = [0, 7, 0], sizes = [4, 1, 8], strides = [1, 1, 1]} : vector<4x8x16xf32> to vector<4x1x8xf32>
    %83 = vector.shape_cast %82 : vector<4x1x8xf32> to vector<4x8xf32>
    %84 = tpu.concatenate %69, %71, %73, %75, %77, %79, %81, %83 in 1 : vector<4x8xf32>, vector<4x8xf32>, vector<4x8xf32>, vector<4x8xf32>, vector<4x8xf32>, vector<4x8xf32>, vector<4x8xf32>, vector<4x8xf32> -> vector<4x64xf32>
    %c1_18 = arith.constant 1 : index
    %c0_19 = arith.constant 0 : index
    %c0_20 = arith.constant 0 : index
    %c0_21 = arith.constant 0 : index
    %c0_22 = arith.constant 0 : index
    %85 = vector.load %arg3[%c1_18, %c0_19, %c0_20, %c0_21, %c0_22] : memref<2x1x3x4x64xf32, #tpu.memory_space<vmem>>, vector<1x1x1x4x64xf32>
    %86 = vector.shape_cast %85 : vector<1x1x1x4x64xf32> to vector<4x64xf32>
    %87 = vector.shape_cast %84 : vector<4x64xf32> to vector<1x1x1x4x64xf32>
    tpu.vector_store %arg3[%c1_18, %c0_19, %c0_20, %c0_21, %c0_22], %87 {strides = array<i32>} : memref<2x1x3x4x64xf32, #tpu.memory_space<vmem>>, vector<1x1x1x4x64xf32>,
    %88 = vector.extract_strided_slice %67 {offsets = [0, 0, 4], sizes = [4, 1, 8], strides = [1, 1, 1]} : vector<4x8x16xf32> to vector<4x1x8xf32>
    %89 = vector.shape_cast %88 : vector<4x1x8xf32> to vector<4x8xf32>
    %90 = vector.extract_strided_slice %67 {offsets = [0, 1, 4], sizes = [4, 1, 8], strides = [1, 1, 1]} : vector<4x8x16xf32> to vector<4x1x8xf32>
    %91 = vector.shape_cast %90 : vector<4x1x8xf32> to vector<4x8xf32>
    %92 = vector.extract_strided_slice %67 {offsets = [0, 2, 4], sizes = [4, 1, 8], strides = [1, 1, 1]} : vector<4x8x16xf32> to vector<4x1x8xf32>
    %93 = vector.shape_cast %92 : vector<4x1x8xf32> to vector<4x8xf32>
    %94 = vector.extract_strided_slice %67 {offsets = [0, 3, 4], sizes = [4, 1, 8], strides = [1, 1, 1]} : vector<4x8x16xf32> to vector<4x1x8xf32>
    %95 = vector.shape_cast %94 : vector<4x1x8xf32> to vector<4x8xf32>
    %96 = vector.extract_strided_slice %67 {offsets = [0, 4, 4], sizes = [4, 1, 8], strides = [1, 1, 1]} : vector<4x8x16xf32> to vector<4x1x8xf32>
    %97 = vector.shape_cast %96 : vector<4x1x8xf32> to vector<4x8xf32>
    %98 = vector.extract_strided_slice %67 {offsets = [0, 5, 4], sizes = [4, 1, 8], strides = [1, 1, 1]} : vector<4x8x16xf32> to vector<4x1x8xf32>
    %99 = vector.shape_cast %98 : vector<4x1x8xf32> to vector<4x8xf32>
    %100 = vector.extract_strided_slice %67 {offsets = [0, 6, 4], sizes = [4, 1, 8], strides = [1, 1, 1]} : vector<4x8x16xf32> to vector<4x1x8xf32>
    %101 = vector.shape_cast %100 : vector<4x1x8xf32> to vector<4x8xf32>
    %102 = vector.extract_strided_slice %67 {offsets = [0, 7, 4], sizes = [4, 1, 8], strides = [1, 1, 1]} : vector<4x8x16xf32> to vector<4x1x8xf32>
    %103 = vector.shape_cast %102 : vector<4x1x8xf32> to vector<4x8xf32>
    %104 = tpu.concatenate %89, %91, %93, %95, %97, %99, %101, %103 in 1 : vector<4x8xf32>, vector<4x8xf32>, vector<4x8xf32>, vector<4x8xf32>, vector<4x8xf32>, vector<4x8xf32>, vector<4x8xf32>, vector<4x8xf32> -> vector<4x64xf32>
    %c1_23 = arith.constant 1 : index
    %c0_24 = arith.constant 0 : index
    %c1_25 = arith.constant 1 : index
    %c0_26 = arith.constant 0 : index
    %c0_27 = arith.constant 0 : index
    %105 = vector.load %arg3[%c1_23, %c0_24, %c1_25, %c0_26, %c0_27] : memref<2x1x3x4x64xf32, #tpu.memory_space<vmem>>, vector<1x1x1x4x64xf32>
    %106 = vector.shape_cast %105 : vector<1x1x1x4x64xf32> to vector<4x64xf32>
    %107 = vector.shape_cast %104 : vector<4x64xf32> to vector<1x1x1x4x64xf32>
    tpu.vector_store %arg3[%c1_23, %c0_24, %c1_25, %c0_26, %c0_27], %107 {strides = array<i32>} : memref<2x1x3x4x64xf32, #tpu.memory_space<vmem>>, vector<1x1x1x4x64xf32>,
    %108 = vector.extract_strided_slice %67 {offsets = [0, 0, 8], sizes = [4, 1, 8], strides = [1, 1, 1]} : vector<4x8x16xf32> to vector<4x1x8xf32>
    %109 = vector.shape_cast %108 : vector<4x1x8xf32> to vector<4x8xf32>
    %110 = vector.extract_strided_slice %67 {offsets = [0, 1, 8], sizes = [4, 1, 8], strides = [1, 1, 1]} : vector<4x8x16xf32> to vector<4x1x8xf32>
    %111 = vector.shape_cast %110 : vector<4x1x8xf32> to vector<4x8xf32>
    %112 = vector.extract_strided_slice %67 {offsets = [0, 2, 8], sizes = [4, 1, 8], strides = [1, 1, 1]} : vector<4x8x16xf32> to vector<4x1x8xf32>
    %113 = vector.shape_cast %112 : vector<4x1x8xf32> to vector<4x8xf32>
    %114 = vector.extract_strided_slice %67 {offsets = [0, 3, 8], sizes = [4, 1, 8], strides = [1, 1, 1]} : vector<4x8x16xf32> to vector<4x1x8xf32>
    %115 = vector.shape_cast %114 : vector<4x1x8xf32> to vector<4x8xf32>
    %116 = vector.extract_strided_slice %67 {offsets = [0, 4, 8], sizes = [4, 1, 8], strides = [1, 1, 1]} : vector<4x8x16xf32> to vector<4x1x8xf32>
    %117 = vector.shape_cast %116 : vector<4x1x8xf32> to vector<4x8xf32>
    %118 = vector.extract_strided_slice %67 {offsets = [0, 5, 8], sizes = [4, 1, 8], strides = [1, 1, 1]} : vector<4x8x16xf32> to vector<4x1x8xf32>
    %119 = vector.shape_cast %118 : vector<4x1x8xf32> to vector<4x8xf32>
    %120 = vector.extract_strided_slice %67 {offsets = [0, 6, 8], sizes = [4, 1, 8], strides = [1, 1, 1]} : vector<4x8x16xf32> to vector<4x1x8xf32>
    %121 = vector.shape_cast %120 : vector<4x1x8xf32> to vector<4x8xf32>
    %122 = vector.extract_strided_slice %67 {offsets = [0, 7, 8], sizes = [4, 1, 8], strides = [1, 1, 1]} : vector<4x8x16xf32> to vector<4x1x8xf32>
    %123 = vector.shape_cast %122 : vector<4x1x8xf32> to vector<4x8xf32>
    %124 = tpu.concatenate %109, %111, %113, %115, %117, %119, %121, %123 in 1 : vector<4x8xf32>, vector<4x8xf32>, vector<4x8xf32>, vector<4x8xf32>, vector<4x8xf32>, vector<4x8xf32>, vector<4x8xf32>, vector<4x8xf32> -> vector<4x64xf32>
    %c1_28 = arith.constant 1 : index
    %c0_29 = arith.constant 0 : index
    %c2_30 = arith.constant 2 : index
    %c0_31 = arith.constant 0 : index
    %c0_32 = arith.constant 0 : index
    %125 = vector.load %arg3[%c1_28, %c0_29, %c2_30, %c0_31, %c0_32] : memref<2x1x3x4x64xf32, #tpu.memory_space<vmem>>, vector<1x1x1x4x64xf32>
    %126 = vector.shape_cast %125 : vector<1x1x1x4x64xf32> to vector<4x64xf32>
    %127 = vector.shape_cast %124 : vector<4x64xf32> to vector<1x1x1x4x64xf32>
    tpu.vector_store %arg3[%c1_28, %c0_29, %c2_30, %c0_31, %c0_32], %127 {strides = array<i32>} : memref<2x1x3x4x64xf32, #tpu.memory_space<vmem>>, vector<1x1x1x4x64xf32>,
    return
  }
  func.func @transform_0(%arg0: i32, %arg1: i32) -> (i32, i32, i32, i32) {
    %c0_i32 = arith.constant 0 : i32
    %c0_i32_0 = arith.constant 0 : i32
    %c0_i32_1 = arith.constant 0 : i32
    %c0_i32_2 = arith.constant 0 : i32
    return %arg0, %c0_i32, %c0_i32_0, %c0_i32_1 : i32, i32, i32, i32
  }
  func.func @transform_1(%arg0: i32, %arg1: i32) -> (i32, i32, i32, i32, i32) {
    %c0_i32 = arith.constant 0 : i32
    %c0_i32_0 = arith.constant 0 : i32
    %c0_i32_1 = arith.constant 0 : i32
    %c0_i32_2 = arith.constant 0 : i32
    return %arg0, %arg1, %c0_i32, %c0_i32_0, %c0_i32_1 : i32, i32, i32, i32, i32
  }
}

</mosaic_0001>

<llo_original>
// kernel: tpu_custom_call.1
$region0: #{tpu_custom_call.1}
  #allocation0 [shape = 'u32[]', space=smem, size = 0x4, offset = 0x4, fixed_abs, tag = 'smem constant byte address 0x4 - core index']
  #allocation1 [shape = 'u32[72,128]{1,0:T(1,128)}', space=vmem, size = 0x9000, scoped, tag = 'internal scratch']
  #allocation6 [shape = 's32[]', space=sflag, size = 0x4, offset = 0, fixed_abs, tag = 'sflag constant byte address 0x0 - dummy sync flag']
  %s0 = inlined_call_operand.hbm [shape: f32[2,4,16,16], index: 0, kind: input, shape index: {}]
  %s1 = inlined_call_operand.hbm [shape: f32[2,3,3,4,64], index: 1, kind: output, shape index: {}]
  %s2 = sld [smem:[#allocation0]]
  $region41: #{tpu_custom_call.1} parent=0
    _
  %s4 = ssub.s32 1, %s2
  %s5 = scalar_select 0, %s4, %s2
  $region1: #{tpu_custom_call.1} parent=0
    #allocation2 [shape = 'u8[65536]{0}', space=vmem, size = 0x10000, scoped, tag = 'input window, operand 0, single buffered']
    #allocation3 [shape = 's32[2]{0}', space=sflag, size = 0x8, scoped, tag = 'scoped memory for tpu_custom_call.1']
    #allocation4 [shape = 's32[2]{0}', space=sflag, size = 0x8, scoped, tag = 'scoped memory for tpu_custom_call.1']
    #allocation5 [shape = 'u8[24576]{0}', space=vmem, size = 0x6000, scoped, tag = 'output window, operand 0']
    %6 = vsyncpa [#allocation3], 0
    %7 = vsyncpa [#allocation4], 0
    %s8 = scalar_lea.sflag [#allocation4], 1
    %9 = vsyncpa %s8, 0
    loop: start=0, step=1, limit=5
    $region2: #{tpu_custom_call.1} parent=1 // loop_pre_header
      _
    $region3: #{tpu_custom_call.1} parent=1 // loop_header
      %s11 = sphi 0, %s15
      %p12 = scmp.ge.s32.totalorder %s11, 5
      %s18 = sphi 0, %s30
      %s19 = sphi 0, %s26
      %s20 = sphi 0, %s18
      %s21 = sphi 0, %s19
      %s22 = sphi 0, %s20
      %s23 = sphi 0, %s21
      %s33 = sphi 0, %s35
      %s36 = sphi 0, %s33
      %s37 = sphi 0, %s36
      %s53 = sphi 0, %s37
      %s61 = sphi 0, %s63
      %s64 = sphi 0, %s61
      %s65 = sphi 0, %s64
      %s81 = sphi 0, %s65
    $region4: #{tpu_custom_call.1} parent=1 // loop_header_branch
      %14 = sbr.rel (%p12) target = $region8
    $region5: #{tpu_custom_call.1} parent=1 // loop_body
      %s16 = ssub.s32 %s11, 1
      %s17 = ssub.s32 %s11, 2
      %s24 = sadd.s32 1, %s19
      %p25 = scmp.ge.s32.totalorder %s24, 3
      %s26 = scalar_select %p25, 0, %s24
      %s27 = sadd.s32 1, %s18
      %s28 = scalar_select %p25, %s27, %s18
      %p29 = scmp.ge.s32.totalorder %s28, 1
      %s30 = scalar_select %p29, 0, %s28
      %s31 = ssub.s32 %s18, %s30
      %p32 = scmp.eq.s32.totalorder %s31, 0
      %s34 = sadd.s32 %s33, 1
      %s35 = scalar_select %p32, %s33, %s34
      %p38 = pneg %p32
      %p39 = scmp.eq.s32.totalorder %s11, 2
      %p40 = por %p38, %p39
      %p41 = scmp.ne.s32.totalorder %s33, %s36
      %p42 = scmp.eq.s32.totalorder %s11, 0
      %p43 = por %p41, %p42
      %p44 = scmp.ne.s32.totalorder %s33, %s36
      %p45 = scmp.eq.s32.totalorder %s16, 2
      %p46 = por %p44, %p45
      %p47 = scmp.ne.s32.totalorder %s36, %s37
      %p48 = scmp.eq.s32.totalorder %s16, 0
      %p49 = por %p47, %p48
      %p50 = scmp.ne.s32.totalorder %s36, %s37
      %p51 = scmp.eq.s32.totalorder %s17, 2
      %p52 = por %p50, %p51
      %p54 = scmp.ne.s32.totalorder %s37, %s53
      %p55 = scmp.eq.s32.totalorder %s17, 0
      %p56 = por %p54, %p55
      %s57 = ssub.s32 %s18, %s30
      %s58 = ssub.s32 %s19, %s26
      %s59 = sor.u32 %s57, %s58
      %p60 = scmp.eq.s32.totalorder %s59, 0
      %s62 = sadd.s32 %s61, 1
      %s63 = scalar_select %p60, %s61, %s62
      %p66 = pneg %p60
      %p67 = scmp.eq.s32.totalorder %s11, 2
      %p68 = por %p66, %p67
      %p69 = scmp.ne.s32.totalorder %s61, %s64
      %p70 = scmp.eq.s32.totalorder %s11, 0
      %p71 = por %p69, %p70
      %p72 = scmp.ne.s32.totalorder %s61, %s64
      %p73 = scmp.eq.s32.totalorder %s16, 2
      %p74 = por %p72, %p73
      %p75 = scmp.ne.s32.totalorder %s64, %s65
      %p76 = scmp.eq.s32.totalorder %s16, 0
      %p77 = por %p75, %p76
      %p78 = scmp.ne.s32.totalorder %s64, %s65
      %p79 = scmp.eq.s32.totalorder %s17, 2
      %p80 = por %p78, %p79
      %p82 = scmp.ne.s32.totalorder %s65, %s81
      %p83 = scmp.eq.s32.totalorder %s17, 0
      %p84 = por %p82, %p83
      %p85 = scmp.le.s32.totalorder 1, %s11
      %p86 = scmp.lt.s32.totalorder %s11, 4
      %p87 = pnand %p85, %p86
      %p88 = pneg %p87
      // Predicated region
      $region9: #{tpu_custom_call.1} parent=5 // pred_check
        _
      $region10: #{tpu_custom_call.1} parent=5 // pred_check_branch
        %90 = sbr.rel (%p87) target = $region12
      $region11: #{tpu_custom_call.1} parent=5 // pred_region
        %s91 = ssub.s32 %s11, 1
        // Predicated region
        $region13: #{tpu_custom_call.1} parent=11 // pred_check
          %p92 = pneg %p49
        $region14: #{tpu_custom_call.1} parent=11 // pred_check_branch
          %94 = sbr.rel (%p92) target = $region16
        $region15: #{tpu_custom_call.1} parent=11 // pred_region
          %s95 = smul.u32 2, %s20
          %97 = vsyncadd [#allocation3], 0
          %s98 = smul.addr %s95, 8
          %s99 = smul.addr %s98, 8
          %s100 = scalar_lea.hbm %s0, %s99
          %s101 = sshll.u32 %s100, 4
          %s102 = int_to_ptr.hbm [resolvable:$true] %s101
          %s103 = sshll.u32 [#allocation2], 4
          %s104 = int_to_ptr.vmem [resolvable:$true] %s103
          %109 = dma.hbm_to_vmem [thread:$0]  %s102, 2048, %s104, [#allocation3], 128, 128, 8
        $region16: #{tpu_custom_call.1} parent=11 // pred_fallthru
          _
      $region12: #{tpu_custom_call.1} parent=5 // pred_fallthru
        _
      %p110 = scmp.lt.s32.totalorder %s11, 3
      // Predicated region
      $region17: #{tpu_custom_call.1} parent=5 // pred_check
        %p111 = pneg %p110
      $region18: #{tpu_custom_call.1} parent=5 // pred_check_branch
        %113 = sbr.rel (%p111) target = $region20
      $region19: #{tpu_custom_call.1} parent=5 // pred_region
        _
      $region20: #{tpu_custom_call.1} parent=5 // pred_fallthru
        _
      %p114 = scmp.le.s32.totalorder 1, %s11
      %p115 = scmp.lt.s32.totalorder %s11, 4
      %p116 = pnand %p114, %p115
      %p117 = pneg %p116
      // Predicated region
      $region21: #{tpu_custom_call.1} parent=5 // pred_check
        _
      $region22: #{tpu_custom_call.1} parent=5 // pred_check_branch
        %119 = sbr.rel (%p116) target = $region24
      $region23: #{tpu_custom_call.1} parent=5 // pred_region
        %s120 = ssub.s32 %s11, 1
        // Predicated region
        $region25: #{tpu_custom_call.1} parent=23 // pred_check
          %p121 = pneg %p49
        $region26: #{tpu_custom_call.1} parent=23 // pred_check_branch
          %123 = sbr.rel (%p121) target = $region28
        $region27: #{tpu_custom_call.1} parent=23 // pred_region
          %125 = dma.done [#allocation3], 2048
        $region28: #{tpu_custom_call.1} parent=23 // pred_fallthru
          _
        %p126 = pneg %p49
        %p127 = pneg %p46
        %p128 = pneg %p77
        %p129 = pneg %p74
        %s130 = sand.u32 %s64, 1
        %s131 = scalar_lea.sflag [#allocation4], %s130
        %s132 = sand.u32 %s64, 1
        %s133 = smul.addr %s132, 24
        %s134 = scalar_lea.vmem [#allocation5], %s133
        %s135 = smul.u32 2, %s20
        %s136 = smul.u32 2, %s20
        %s137 = smul.u32 %s21, 4
        %s138 = scalar_lea.vmem [#allocation2], %s137
        %v139 = vld [vmem:[%s138] sm:$0xff]
        %v140 = vld [vmem:[%s138 + $0x10] sm:$0xff]
        %v141 = vld [vmem:[%s138 + $0x20] sm:$0xff]
        %v142 = vld [vmem:[%s138 + $0x30] sm:$0xff]
        %v147 = vrot.slane %v140, 7
        %vm148 = vcmask 1041409
        %v149 = vsel %vm148, %v147, %v139
        %v150 = vrot.slane %v141, 6
        %vm151 = vcmask 1042434
        %v152 = vsel %vm151, %v150, %v149
        %v153 = vrot.slane %v142, 5
        %vm154 = vcmask 1043459
        %v155 = vsel %vm154, %v153, %v152
        %v157 = vrot.slane %v139, 1
        %v158 = vsel %vm148, %v140, %v157
        %v159 = vrot.slane %v141, 7
        %v160 = vsel %vm151, %v159, %v158
        %v161 = vrot.slane %v142, 6
        %v162 = vsel %vm154, %v161, %v160
        %163 = vrot.lane.b32.xlu0 %v162, 8
        %v164 = vpop.permute.xlu0 %163
        %v166 = vrot.slane %v139, 2
        %v167 = vrot.slane %v140, 1
        %v168 = vsel %vm148, %v167, %v166
        %v169 = vsel %vm151, %v141, %v168
        %v170 = vrot.slane %v142, 7
        %v171 = vsel %vm154, %v170, %v169
        %172 = vrot.lane.b32.xlu0 %v171, 16
        %v173 = vpop.permute.xlu0 %172
        %v175 = vrot.slane %v139, 3
        %v176 = vrot.slane %v140, 2
        %v177 = vsel %vm148, %v176, %v175
        %v178 = vrot.slane %v141, 1
        %v179 = vsel %vm151, %v178, %v177
        %v180 = vsel %vm154, %v142, %v179
        %181 = vrot.lane.b32.xlu0 %v180, 24
        %v182 = vpop.permute.xlu0 %181
        %v184 = vrot.slane %v139, 4
        %v185 = vrot.slane %v140, 3
        %v186 = vsel %vm148, %v185, %v184
        %v187 = vrot.slane %v141, 2
        %v188 = vsel %vm151, %v187, %v186
        %v189 = vrot.slane %v142, 1
        %v190 = vsel %vm154, %v189, %v188
        %191 = vrot.lane.b32.xlu0 %v190, 32
        %v192 = vpop.permute.xlu0 %191
        %v194 = vrot.slane %v139, 5
        %v195 = vrot.slane %v140, 4
        %v196 = vsel %vm148, %v195, %v194
        %v197 = vrot.slane %v141, 3
        %v198 = vsel %vm151, %v197, %v196
        %v199 = vrot.slane %v142, 2
        %v200 = vsel %vm154, %v199, %v198
        %201 = vrot.lane.b32.xlu0 %v200, 40
        %v202 = vpop.permute.xlu0 %201
        %v204 = vrot.slane %v139, 6
        %v205 = vrot.slane %v140, 5
        %v206 = vsel %vm148, %v205, %v204
        %v207 = vrot.slane %v141, 4
        %v208 = vsel %vm151, %v207, %v206
        %v209 = vrot.slane %v142, 3
        %v210 = vsel %vm154, %v209, %v208
        %211 = vrot.lane.b32.xlu0 %v210, 48
        %v212 = vpop.permute.xlu0 %211
        %v214 = vrot.slane %v139, 7
        %v215 = vrot.slane %v140, 6
        %v216 = vsel %vm148, %v215, %v214
        %v217 = vrot.slane %v141, 5
        %v218 = vsel %vm151, %v217, %v216
        %v219 = vrot.slane %v142, 4
        %v220 = vsel %vm154, %v219, %v218
        %221 = vrot.lane.b32.xlu0 %v220, 56
        %v222 = vpop.permute.xlu0 %221
        %vm224 = vcmask 64512
        %v225 = vsel %vm224, %v155, %v164
        %vm226 = vcmask 130048
        %v227 = vsel %vm226, %v225, %v173
        %vm228 = vcmask 195584
        %v229 = vsel %vm228, %v227, %v182
        %vm230 = vcmask 261120
        %v231 = vsel %vm230, %v229, %v192
        %vm232 = vcmask 326656
        %v233 = vsel %vm232, %v231, %v202
        %vm234 = vcmask 392192
        %v235 = vsel %vm234, %v233, %v212
        %vm236 = vcmask 457728
        %v237 = vsel %vm236, %v235, %v222
        %vm238 = vcmask 519168
        %239 = vst.msk [vmem:[%s134] sm:$0xf] %vm238, %v237
        %240 = vrot.lane.b32.xlu0 %v155, 124
        %v241 = vpop.permute.xlu0 %240
        %243 = vrot.lane.b32.xlu0 %v162, 4
        %v244 = vpop.permute.xlu0 %243
        %246 = vrot.lane.b32.xlu0 %v171, 12
        %v247 = vpop.permute.xlu0 %246
        %249 = vrot.lane.b32.xlu0 %v180, 20
        %v250 = vpop.permute.xlu0 %249
        %252 = vrot.lane.b32.xlu0 %v190, 28
        %v253 = vpop.permute.xlu0 %252
        %255 = vrot.lane.b32.xlu0 %v200, 36
        %v256 = vpop.permute.xlu0 %255
        %258 = vrot.lane.b32.xlu0 %v210, 44
        %v259 = vpop.permute.xlu0 %258
        %261 = vrot.lane.b32.xlu0 %v220, 52
        %v262 = vpop.permute.xlu0 %261
        %v264 = vsel %vm224, %v241, %v244
        %v265 = vsel %vm226, %v264, %v247
        %v266 = vsel %vm228, %v265, %v250
        %v267 = vsel %vm230, %v266, %v253
        %v268 = vsel %vm232, %v267, %v256
        %v269 = vsel %vm234, %v268, %v259
        %v270 = vsel %vm236, %v269, %v262
        %s271 = scalar_lea.vmem %s134, 4 [#allocation5]
        %272 = vst.msk [vmem:[%s271] sm:$0xf] %vm238, %v270
        %273 = vrot.lane.b32.xlu0 %v155, 120
        %v274 = vpop.permute.xlu0 %273
        %277 = vrot.lane.b32.xlu0 %v171, 8
        %v278 = vpop.permute.xlu0 %277
        %280 = vrot.lane.b32.xlu0 %v180, 16
        %v281 = vpop.permute.xlu0 %280
        %283 = vrot.lane.b32.xlu0 %v190, 24
        %v284 = vpop.permute.xlu0 %283
        %286 = vrot.lane.b32.xlu0 %v200, 32
        %v287 = vpop.permute.xlu0 %286
        %289 = vrot.lane.b32.xlu0 %v210, 40
        %v290 = vpop.permute.xlu0 %289
        %292 = vrot.lane.b32.xlu0 %v220, 48
        %v293 = vpop.permute.xlu0 %292
        %v295 = vsel %vm224, %v274, %v162
        %v296 = vsel %vm226, %v295, %v278
        %v297 = vsel %vm228, %v296, %v281
        %v298 = vsel %vm230, %v297, %v284
        %v299 = vsel %vm232, %v298, %v287
        %v300 = vsel %vm234, %v299, %v290
        %v301 = vsel %vm236, %v300, %v293
        %s302 = scalar_lea.vmem %s134, 8 [#allocation5]
        %303 = vst.msk [vmem:[%s302] sm:$0xf] %vm238, %v301
        %s304 = sadd.s32 %s137, 64
        %s305 = scalar_lea.vmem [#allocation2], %s304
        %v306 = vld [vmem:[%s305] sm:$0xff]
        %v307 = vld [vmem:[%s305 + $0x10] sm:$0xff]
        %v308 = vld [vmem:[%s305 + $0x20] sm:$0xff]
        %v309 = vld [vmem:[%s305 + $0x30] sm:$0xff]
        %v314 = vrot.slane %v307, 7
        %v315 = vsel %vm148, %v314, %v306
        %v316 = vrot.slane %v308, 6
        %v317 = vsel %vm151, %v316, %v315
        %v318 = vrot.slane %v309, 5
        %v319 = vsel %vm154, %v318, %v317
        %v321 = vrot.slane %v306, 1
        %v322 = vsel %vm148, %v307, %v321
        %v323 = vrot.slane %v308, 7
        %v324 = vsel %vm151, %v323, %v322
        %v325 = vrot.slane %v309, 6
        %v326 = vsel %vm154, %v325, %v324
        %327 = vrot.lane.b32.xlu0 %v326, 8
        %v328 = vpop.permute.xlu0 %327
        %v330 = vrot.slane %v306, 2
        %v331 = vrot.slane %v307, 1
        %v332 = vsel %vm148, %v331, %v330
        %v333 = vsel %vm151, %v308, %v332
        %v334 = vrot.slane %v309, 7
        %v335 = vsel %vm154, %v334, %v333
        %336 = vrot.lane.b32.xlu0 %v335, 16
        %v337 = vpop.permute.xlu0 %336
        %v339 = vrot.slane %v306, 3
        %v340 = vrot.slane %v307, 2
        %v341 = vsel %vm148, %v340, %v339
        %v342 = vrot.slane %v308, 1
        %v343 = vsel %vm151, %v342, %v341
        %v344 = vsel %vm154, %v309, %v343
        %345 = vrot.lane.b32.xlu0 %v344, 24
        %v346 = vpop.permute.xlu0 %345
        %v348 = vrot.slane %v306, 4
        %v349 = vrot.slane %v307, 3
        %v350 = vsel %vm148, %v349, %v348
        %v351 = vrot.slane %v308, 2
        %v352 = vsel %vm151, %v351, %v350
        %v353 = vrot.slane %v309, 1
        %v354 = vsel %vm154, %v353, %v352
        %355 = vrot.lane.b32.xlu0 %v354, 32
        %v356 = vpop.permute.xlu0 %355
        %v358 = vrot.slane %v306, 5
        %v359 = vrot.slane %v307, 4
        %v360 = vsel %vm148, %v359, %v358
        %v361 = vrot.slane %v308, 3
        %v362 = vsel %vm151, %v361, %v360
        %v363 = vrot.slane %v309, 2
        %v364 = vsel %vm154, %v363, %v362
        %365 = vrot.lane.b32.xlu0 %v364, 40
        %v366 = vpop.permute.xlu0 %365
        %v368 = vrot.slane %v306, 6
        %v369 = vrot.slane %v307, 5
        %v370 = vsel %vm148, %v369, %v368
        %v371 = vrot.slane %v308, 4
        %v372 = vsel %vm151, %v371, %v370
        %v373 = vrot.slane %v309, 3
        %v374 = vsel %vm154, %v373, %v372
        %375 = vrot.lane.b32.xlu0 %v374, 48
        %v376 = vpop.permute.xlu0 %375
        %v378 = vrot.slane %v306, 7
        %v379 = vrot.slane %v307, 6
        %v380 = vsel %vm148, %v379, %v378
        %v381 = vrot.slane %v308, 5
        %v382 = vsel %vm151, %v381, %v380
        %v383 = vrot.slane %v309, 4
        %v384 = vsel %vm154, %v383, %v382
        %385 = vrot.lane.b32.xlu0 %v384, 56
        %v386 = vpop.permute.xlu0 %385
        %v388 = vsel %vm224, %v319, %v328
        %v389 = vsel %vm226, %v388, %v337
        %v390 = vsel %vm228, %v389, %v346
        %v391 = vsel %vm230, %v390, %v356
        %v392 = vsel %vm232, %v391, %v366
        %v393 = vsel %vm234, %v392, %v376
        %v394 = vsel %vm236, %v393, %v386
        %s395 = scalar_lea.vmem %s134, 12 [#allocation5]
        %396 = vst.msk [vmem:[%s395] sm:$0xf] %vm238, %v394
        %397 = vrot.lane.b32.xlu0 %v319, 124
        %v398 = vpop.permute.xlu0 %397
        %400 = vrot.lane.b32.xlu0 %v326, 4
        %v401 = vpop.permute.xlu0 %400
        %403 = vrot.lane.b32.xlu0 %v335, 12
        %v404 = vpop.permute.xlu0 %403
        %406 = vrot.lane.b32.xlu0 %v344, 20
        %v407 = vpop.permute.xlu0 %406
        %409 = vrot.lane.b32.xlu0 %v354, 28
        %v410 = vpop.permute.xlu0 %409
        %412 = vrot.lane.b32.xlu0 %v364, 36
        %v413 = vpop.permute.xlu0 %412
        %415 = vrot.lane.b32.xlu0 %v374, 44
        %v416 = vpop.permute.xlu0 %415
        %418 = vrot.lane.b32.xlu0 %v384, 52
        %v419 = vpop.permute.xlu0 %418
        %v421 = vsel %vm224, %v398, %v401
        %v422 = vsel %vm226, %v421, %v404
        %v423 = vsel %vm228, %v422, %v407
        %v424 = vsel %vm230, %v423, %v410
        %v425 = vsel %vm232, %v424, %v413
        %v426 = vsel %vm234, %v425, %v416
        %v427 = vsel %vm236, %v426, %v419
        %s428 = scalar_lea.vmem %s134, 16 [#allocation5]
        %429 = vst.msk [vmem:[%s428] sm:$0xf] %vm238, %v427
        %430 = vrot.lane.b32.xlu0 %v319, 120
        %v431 = vpop.permute.xlu0 %430
        %434 = vrot.lane.b32.xlu0 %v335, 8
        %v435 = vpop.permute.xlu0 %434
        %437 = vrot.lane.b32.xlu0 %v344, 16
        %v438 = vpop.permute.xlu0 %437
        %440 = vrot.lane.b32.xlu0 %v354, 24
        %v441 = vpop.permute.xlu0 %440
        %443 = vrot.lane.b32.xlu0 %v364, 32
        %v444 = vpop.permute.xlu0 %443
        %446 = vrot.lane.b32.xlu0 %v374, 40
        %v447 = vpop.permute.xlu0 %446
        %449 = vrot.lane.b32.xlu0 %v384, 48
        %v450 = vpop.permute.xlu0 %449
        %v452 = vsel %vm224, %v431, %v326
        %v453 = vsel %vm226, %v452, %v435
        %v454 = vsel %vm228, %v453, %v438
        %v455 = vsel %vm230, %v454, %v441
        %v456 = vsel %vm232, %v455, %v444
        %v457 = vsel %vm234, %v456, %v447
        %v458 = vsel %vm236, %v457, %v450
        %s459 = scalar_lea.vmem %s134, 20 [#allocation5]
        %460 = vst.msk [vmem:[%s459] sm:$0xf] %vm238, %v458
        %s461 = sand.u32 %s64, 1
        %s462 = scalar_lea.sflag [#allocation4], %s461
        %s463 = sand.u32 %s64, 1
        %s464 = smul.addr %s463, 24
        %s465 = scalar_lea.vmem [#allocation5], %s464
        // Predicated region
        $region29: #{tpu_custom_call.1} parent=23 // pred_check
          %p466 = pneg %p74
        $region30: #{tpu_custom_call.1} parent=23 // pred_check_branch
          %468 = sbr.rel (%p466) target = $region32
        $region31: #{tpu_custom_call.1} parent=23 // pred_region
          #allocation7 [shape = 'u32[6]{0}', space=smem, size = 0x18, scoped, tag = 'DMA stride descriptor']
          %s469 = smul.u32 2, %s20
          %471 = vsyncadd %s462, 0
          %s472 = smul.addr %s21, 3
          %s473 = smul.addr %s469, 9
          %s474 = sadd.s32 %s472, %s473
          %s475 = smul.addr %s474, 4
          %s476 = scalar_lea.hbm %s1, %s475
          %s478 = sshll.u32 1, 14
          %s479 = sxor.u32 4294967295, %s478
          %s482 = sshll.u32 7, 18
          %s483 = sxor.u32 4294967295, %s482
          %s484 = sand.u32 0, %s483
          %s486 = sor.u32 %s484, 0
          %s487 = sshll.u32 %s465, 4
          %s488 = int_to_ptr.vmem [resolvable:$true] %s487
          %s489 = sshll.u32 %s476, 4
          %s490 = int_to_ptr.hbm [resolvable:$true] %s489
          %496 = sst [smem:[#allocation7]] 192
          %s497 = scalar_lea.smem [#allocation7], 1
          %498 = sst [smem:[%s497]] 576
          %s499 = scalar_lea.smem [#allocation7], 2
          %500 = sst [smem:[%s499]] 3
          %s501 = scalar_lea.smem [#allocation7], 3
          %502 = sst [smem:[%s501]] 64
          %s503 = scalar_lea.smem [#allocation7], 4
          %504 = sst [smem:[%s503]] 64
          %s505 = scalar_lea.smem [#allocation7], 5
          %506 = sst [smem:[%s505]] 4
          %508 = dma.general %s488, 384, %s490, %s462, [#allocation6], [#allocation7], %s486, 0
        $region32: #{tpu_custom_call.1} parent=23 // pred_fallthru
          _
      $region24: #{tpu_custom_call.1} parent=5 // pred_fallthru
        _
      %p509 = scmp.le.s32.totalorder 2, %s11
      // Predicated region
      $region33: #{tpu_custom_call.1} parent=5 // pred_check
        %p510 = pneg %p509
      $region34: #{tpu_custom_call.1} parent=5 // pred_check_branch
        %512 = sbr.rel (%p510) target = $region36
      $region35: #{tpu_custom_call.1} parent=5 // pred_region
        %s513 = ssub.s32 %s11, 2
        // Predicated region
        $region37: #{tpu_custom_call.1} parent=35 // pred_check
          %p514 = pneg %p80
        $region38: #{tpu_custom_call.1} parent=35 // pred_check_branch
          %516 = sbr.rel (%p514) target = $region40
        $region39: #{tpu_custom_call.1} parent=35 // pred_region
          %s517 = sand.u32 %s65, 1
          %s518 = scalar_lea.sflag [#allocation4], %s517
          %s519 = sand.u32 %s65, 1
          %s520 = smul.addr %s519, 24
          %s521 = scalar_lea.vmem [#allocation5], %s520
          %523 = dma.done %s518, 384
        $region40: #{tpu_custom_call.1} parent=35 // pred_fallthru
          _
      $region36: #{tpu_custom_call.1} parent=5 // pred_fallthru
        _
    $region6: #{tpu_custom_call.1} parent=1 // loop_footer
      %s15 = sadd.s32 1, %s11
    $region7: #{tpu_custom_call.1} parent=1 // loop_footer_branch
      %10 = sbr.rel target = $region3
    $region8: #{tpu_custom_call.1} parent=1 // loop_exit
      _
    %524 = vsyncpa [#allocation3], 1
    %s525 = scalar_lea.sflag [#allocation3], 1
    %526 = vsyncpa %s525, 1
    %527 = vsyncpa [#allocation4], 1
    %s528 = scalar_lea.sflag [#allocation4], 1
    %529 = vsyncpa %s528, 1

</llo_original>
